<compile_context>
chip_gen: v5e
topology: v5e:2x2
jax: 0.10.0
libtpu: 0.0.40
codegen_flags: <defaults>
</compile_context>

<pallas_src>
import jax
import jax.numpy as jnp
from jax import lax
from jax.experimental import pallas as pl
from jax.experimental.pallas import tpu as pltpu

# ---------------- problem sizes (small, synthetic) ----------------
N, C_IN, H, W = 2, 4, 16, 16
C_OUT, KH, KW = 8, 3, 3
PAD = 1
POWER_ITERATIONS = 1
EPS = 1e-12
assert POWER_ITERATIONS >= 1

HEIGHT = C_OUT                  # spectral-norm "height" (w.view(height, -1))
WIDTH = C_IN * KH * KW          # spectral-norm "width"  (= 36)
WIDTH_AUG = WIDTH + 1           # + bias column folded into the GEMM K dim
OH, OW = H, W                   # 3x3, stride 1, pad 1 -> same spatial size
PIX = OH * OW                   # per-sample pixels (256, multiple of 128)
NPIX = N * PIX                  # lane-dense GEMM width (512)


# ---------------- fused kernel: power iteration + sigma + implicit-GEMM conv ----------------
def _fused_kernel(w_ref, u_ref, p_ref, y_ref, u_out_ref, v_out_ref):
    # w_ref: (HEIGHT, WIDTH+1) = [w_bar.view(height,-1) | bias]
    # u_ref: (1, HEIGHT)
    # p_ref: (WIDTH+1, N*PIX)  batched im2col patches with a ones row appended
    # y_ref: (N, C_OUT, PIX)   u_out_ref: (1, HEIGHT)   v_out_ref: (1, WIDTH)
    w_aug = w_ref[...]
    w = w_aug[:, :WIDTH]          # spectral norm acts on the weight columns only
    u = u_ref[...]

    # --- power iteration (serial latency chain; MXU matvecs + EUP reciprocals) ---
    for _ in range(POWER_ITERATIONS):
        # v = l2normalize(W^T u)  as a row-vector matvec.
        wtu = jnp.dot(u, w, preferred_element_type=jnp.float32)            # (1, WIDTH)
        nrm_v = jnp.sqrt(jnp.sum(wtu * wtu, keepdims=True))                # (1, 1)
        v = wtu * pl.reciprocal(nrm_v + EPS, approx=True)
        # u = l2normalize(W v)  (contract last dims -> (W v)^T as a row).
        wv = lax.dot_general(v, w, (((1,), (1,)), ((), ())),
                             preferred_element_type=jnp.float32)           # (1, HEIGHT)
        nrm_u = jnp.sqrt(jnp.sum(wv * wv, keepdims=True))                  # (1, 1)
        inv_nrm_u = pl.reciprocal(nrm_u + EPS, approx=True)
        u = wv * inv_nrm_u

    # sigma = u . (W v) = ||Wv||^2 / (||Wv|| + eps): reuse the last iteration's
    # norm instead of re-running the W v dot + cross-lane reduce.
    sigma = nrm_u * nrm_u * inv_nrm_u                                       # (1, 1)
    inv_sigma = pl.reciprocal(sigma, approx=True)                           # (1, 1)

    # Scale only the weight columns by 1/sigma; the appended bias column stays 1x.
    col = lax.broadcasted_iota(jnp.int32, (1, WIDTH_AUG), 1)
    w_s = w_aug * jnp.where(col < WIDTH, inv_sigma, 1.0)                    # (HEIGHT, WIDTH+1)

    # Implicit-GEMM conv for the whole batch in one MXU pass:
    # (C_OUT, K=37) @ (K, N*PIX=512); bias comes in via the ones row of p.
    y = jnp.dot(w_s, p_ref[...], preferred_element_type=jnp.float32)        # (C_OUT, N*PIX)
    for n in range(N):                                                       # static, N=2
        y_ref[n] = y[:, n * PIX:(n + 1) * PIX].astype(y_ref.dtype)           # 256-lane stores

    u_out_ref[...] = u
    v_out_ref[...] = v

    # TODO(synk): at production H,W tile PIX over a grid, compute 1/sigma once
    # (wrapper-side matvec or step-0 SMEM scratch under "arbitrary" semantics),
    # move im2col in-kernel (DMA padded x, build the 9 taps in VMEM), and size
    # the PIX tile against scoped VMEM per generation (v5e 16 MiB, v7x 32 MiB
    # scoped / 64 MiB physical) via vmem_limit_bytes.


def _fused_call(w_aug, u_row, patches_aug):
    f32 = jnp.float32
    out_shapes = (
        jax.ShapeDtypeStruct((N, C_OUT, PIX), f32),   # conv output, NCHW-flat
        jax.ShapeDtypeStruct((1, HEIGHT), f32),       # updated u
        jax.ShapeDtypeStruct((1, WIDTH), f32),        # updated v
    )
    cost = pl.CostEstimate(
        flops=2 * C_OUT * WIDTH_AUG * NPIX + POWER_ITERATIONS * 4 * HEIGHT * WIDTH,
        transcendentals=3 * POWER_ITERATIONS + 2,
        bytes_accessed=4 * (HEIGHT * WIDTH_AUG + HEIGHT + WIDTH_AUG * NPIX
                            + N * C_OUT * PIX + HEIGHT + WIDTH),
    )
    return pl.pallas_call(
        _fused_kernel,
        out_shape=out_shapes,
        grid=(1,),   # single fused step: everything fits comfortably in VMEM
        in_specs=[
            pl.BlockSpec((HEIGHT, WIDTH_AUG), lambda i: (0, 0)),   # [w | bias]
            pl.BlockSpec((1, HEIGHT), lambda i: (0, 0)),           # u
            pl.BlockSpec((WIDTH_AUG, NPIX), lambda i: (0, 0)),     # patches (+ones row)
        ],
        out_specs=(
            pl.BlockSpec((N, C_OUT, PIX), lambda i: (0, 0, 0)),
            pl.BlockSpec((1, HEIGHT), lambda i: (0, 0)),
            pl.BlockSpec((1, WIDTH), lambda i: (0, 0)),
        ),
        compiler_params=pltpu.CompilerParams(dimension_semantics=("arbitrary",)),
        cost_estimate=cost,
    )(w_aug, u_row, patches_aug)


# ---------------- SpectralNorm(Conv2d) forward ----------------
def l2normalize(v, eps=EPS):
    return v / (jnp.linalg.norm(v) + eps)


@jax.jit
def spectral_norm_conv_forward(x, w_bar, u, v, bias):
    """x: (N,C_IN,H,W) NCHW; w_bar: (C_OUT,C_IN,KH,KW); u: (HEIGHT,); v: (WIDTH,); bias: (C_OUT,)."""
    del v  # with power_iterations >= 1, the stored v is overwritten before any use
    w_flat = w_bar.reshape(HEIGHT, WIDTH)
    w_aug = jnp.concatenate([w_flat, bias.reshape(C_OUT, 1)], axis=1)     # (8, 37)

    # im2col glue (XLA): build patches directly in the lane-dense (WIDTH, N*PIX)
    # layout the single-GEMM kernel consumes; row order (c, kh, kw) matches
    # w.view(height, -1), column order is n-major so the output is NCHW-flat.
    # TODO(synk): at production H,W move im2col into the kernel to avoid the
    # 9x patch inflation round trip through HBM.
    xp = jnp.pad(x, ((0, 0), (0, 0), (PAD, PAD), (PAD, PAD)))
    slabs = [xp[:, :, kh:kh + OH, kw:kw + OW] for kh in range(KH) for kw in range(KW)]
    taps = jnp.stack(slabs, axis=0)                                       # (9, N, C_IN, OH, OW)
    patches = jnp.transpose(taps, (2, 0, 1, 3, 4)).reshape(WIDTH, NPIX)   # (36, N*PIX)
    patches_aug = jnp.concatenate([patches, jnp.ones((1, NPIX), x.dtype)], axis=0)  # (37, N*PIX)

    y_flat, u_row, v_row = _fused_call(w_aug, u.reshape(1, HEIGHT), patches_aug)

    y = y_flat.reshape(N, C_OUT, OH, OW)     # already NCHW-ordered; free reshape
    return y, u_row[0], v_row[0]


# ---------------- pure-JAX reference (sanity check only) ----------------
def _reference_forward(x, w_bar, u, v, bias):
    hp = lax.Precision.HIGHEST
    w_flat = w_bar.reshape(HEIGHT, WIDTH)
    for _ in range(POWER_ITERATIONS):
        v = l2normalize(jnp.dot(w_flat.T, u, precision=hp))
        u = l2normalize(jnp.dot(w_flat, v, precision=hp))
    sigma = jnp.dot(u, jnp.dot(w_flat, v, precision=hp), precision=hp)
    w_n = w_bar / sigma
    y = lax.conv_general_dilated(x, w_n, window_strides=(1, 1),
                                 padding=((PAD, PAD), (PAD, PAD)),
                                 dimension_numbers=("NCHW", "OIHW", "NCHW"),
                                 precision=hp)
    return y + bias.reshape(1, C_OUT, 1, 1), u, v


if __name__ == "__main__":
    key = jax.random.PRNGKey(0)
    k_x, k_w, k_u, k_v, k_b = jax.random.split(key, 5)

    # Deterministic parameter init (mirrors SpectralNorm._make_params shapes).
    x = jax.random.normal(k_x, (N, C_IN, H, W), dtype=jnp.float32)
    w_bar = jax.random.normal(k_w, (C_OUT, C_IN, KH, KW), dtype=jnp.float32) * 0.1
    bias = jax.random.normal(k_b, (C_OUT,), dtype=jnp.float32) * 0.1
    u = l2normalize(jax.random.normal(k_u, (HEIGHT,), dtype=jnp.float32))
    v = l2normalize(jax.random.normal(k_v, (WIDTH,), dtype=jnp.float32))

    y, u_new, v_new = spectral_norm_conv_forward(x, w_bar, u, v, bias)
    jax.block_until_ready((y, u_new, v_new))

    assert y.shape == (N, C_OUT, OH, OW)
    assert u_new.shape == (HEIGHT,) and v_new.shape == (WIDTH,)

    # Sanity check vs. pure-JAX reference (loose tol: MXU f32 dots run at default
    # precision and the scalar reciprocals use the approx EUP path).
    y_exp, u_exp, v_exp = _reference_forward(x, w_bar, u, v, bias)
    assert jnp.allclose(y, y_exp, atol=2e-2, rtol=2e-2)
    assert jnp.allclose(u_new, u_exp, atol=2e-2, rtol=2e-2)
    assert jnp.allclose(v_new, v_exp, atol=2e-2, rtol=2e-2)

    print("KERNEL_OK")
</pallas_src>

<mosaic_0001>
module attributes {stable_mosaic.version = 11 : i64} {
  func.func @_fused_kernel(%arg0: i32, %arg1: memref<8x37xf32, #tpu.memory_space<vmem>>, %arg2: memref<1x8xf32, #tpu.memory_space<vmem>>, %arg3: memref<37x512xf32, #tpu.memory_space<vmem>>, %arg4: memref<2x8x256xf32, #tpu.memory_space<vmem>>, %arg5: memref<1x8xf32, #tpu.memory_space<vmem>>, %arg6: memref<1x36xf32, #tpu.memory_space<vmem>>) attributes {dimension_semantics = [#tpu.dimension_semantics<arbitrary>], iteration_bounds = array<i64: 1>, scalar_prefetch = 0 : i64, scratch_operands = 0 : i64, tpu.core_type = #tpu.core_type<tc>, window_params = [{pipeline_mode = #tpu.pipeline_mode<synchronous>, transform_indices = @transform_0, window_bounds = array<i64: 8, 37>}, {pipeline_mode = #tpu.pipeline_mode<synchronous>, transform_indices = @transform_1, window_bounds = array<i64: 1, 8>}, {pipeline_mode = #tpu.pipeline_mode<synchronous>, transform_indices = @transform_2, window_bounds = array<i64: 37, 512>}, {pipeline_mode = #tpu.pipeline_mode<synchronous>, transform_indices = @transform_3, window_bounds = array<i64: 2, 8, 256>}, {pipeline_mode = #tpu.pipeline_mode<synchronous>, transform_indices = @transform_4, window_bounds = array<i64: 1, 8>}, {pipeline_mode = #tpu.pipeline_mode<synchronous>, transform_indices = @transform_5, window_bounds = array<i64: 1, 36>}]} {
    %c0 = arith.constant 0 : index
    %c0_0 = arith.constant 0 : index
    %0 = vector.load %arg1[%c0, %c0_0] : memref<8x37xf32, #tpu.memory_space<vmem>>, vector<8x37xf32>
    %1 = vector.extract_strided_slice %0 {offsets = [0, 0], sizes = [8, 36], strides = [1, 1]} : vector<8x37xf32> to vector<8x36xf32>
    %c0_1 = arith.constant 0 : index
    %c0_2 = arith.constant 0 : index
    %2 = vector.load %arg2[%c0_1, %c0_2] : memref<1x8xf32, #tpu.memory_space<vmem>>, vector<1x8xf32>
    %cst = arith.constant dense<0.000000e+00> : vector<1x36xf32>
    %3 = tpu.matmul %2, %1, %cst {dimension_numbers = #tpu.dot_dimension_numbers<[1], [0], [0], [1], [0, 0, 1, 1], [], []>} : vector<1x8xf32>, vector<8x36xf32>, vector<1x36xf32> -> vector<1x36xf32>
    %4 = arith.mulf %3, %3 : vector<1x36xf32>
    %5 = vector.shape_cast %4 : vector<1x36xf32> to vector<1x1x36xf32>
    %cst_3 = arith.constant dense<0.000000e+00> : vector<1xf32>
    %6 = vector.multi_reduction <add>, %5, %cst_3 [1, 2] : vector<1x1x36xf32> to vector<1xf32>
    %7 = vector.shape_cast %6 : vector<1xf32> to vector<1x1x1xf32>
    %8 = vector.extract %7[0, 0, 0] : f32 from vector<1x1x1xf32>
    %9 = vector.broadcast %8 : f32 to vector<1x1xf32>
    %10 = math.sqrt %9 : vector<1x1xf32>
    %cst_4 = arith.constant 9.99999996E-13 : f32
    %11 = vector.broadcast %cst_4 : f32 to vector<1x1xf32>
    %12 = arith.addf %10, %11 : vector<1x1xf32>
    %13 = tpu.reciprocal %12 {approx = true} : vector<1x1xf32> -> vector<1x1xf32>
    %14 = vector.broadcast %13 : vector<1x1xf32> to vector<1x36xf32>
    %15 = arith.mulf %3, %14 : vector<1x36xf32>
    %cst_5 = arith.constant dense<0.000000e+00> : vector<1x8xf32>
    %16 = tpu.matmul %15, %1, %cst_5 {dimension_numbers = #tpu.dot_dimension_numbers<[1], [1], [0], [0], [0, 0, 1, 0], [], []>} : vector<1x36xf32>, vector<8x36xf32>, vector<1x8xf32> -> vector<1x8xf32>
    %17 = arith.mulf %16, %16 : vector<1x8xf32>
    %18 = vector.shape_cast %17 : vector<1x8xf32> to vector<1x1x8xf32>
    %cst_6 = arith.constant dense<0.000000e+00> : vector<1xf32>
    %19 = vector.multi_reduction <add>, %18, %cst_6 [1, 2] : vector<1x1x8xf32> to vector<1xf32>
    %20 = vector.shape_cast %19 : vector<1xf32> to vector<1x1x1xf32>
    %21 = vector.extract %20[0, 0, 0] : f32 from vector<1x1x1xf32>
    %22 = vector.broadcast %21 : f32 to vector<1x1xf32>
    %23 = math.sqrt %22 : vector<1x1xf32>
    %cst_7 = arith.constant 9.99999996E-13 : f32
    %24 = vector.broadcast %cst_7 : f32 to vector<1x1xf32>
    %25 = arith.addf %23, %24 : vector<1x1xf32>
    %26 = tpu.reciprocal %25 {approx = true} : vector<1x1xf32> -> vector<1x1xf32>
    %27 = vector.broadcast %26 : vector<1x1xf32> to vector<1x8xf32>
    %28 = arith.mulf %16, %27 : vector<1x8xf32>
    %29 = arith.mulf %23, %23 : vector<1x1xf32>
    %30 = arith.mulf %29, %26 : vector<1x1xf32>
    %31 = tpu.reciprocal %30 {approx = true} : vector<1x1xf32> -> vector<1x1xf32>
    %32 = tpu.iota {dimensions = array<i32: 1>} : vector<1x37xi32>
    %c36_i32 = arith.constant 36 : i32
    %33 = vector.broadcast %c36_i32 : i32 to vector<1x37xi32>
    %34 = arith.cmpi slt, %32, %33 : vector<1x37xi32>
    %cst_8 = arith.constant 1.000000e+00 : f32
    %35 = vector.shape_cast %31 : vector<1x1xf32> to vector<1x1xf32>
    %36 = vector.broadcast %35 : vector<1x1xf32> to vector<1x37xf32>
    %37 = vector.broadcast %cst_8 : f32 to vector<1x37xf32>
    %38 = arith.select %34, %36, %37 : vector<1x37xi1>, vector<1x37xf32>
    %39 = vector.broadcast %38 : vector<1x37xf32> to vector<8x37xf32>
    %40 = arith.mulf %0, %39 : vector<8x37xf32>
    %c0_9 = arith.constant 0 : index
    %c0_10 = arith.constant 0 : index
    %41 = vector.load %arg3[%c0_9, %c0_10] : memref<37x512xf32, #tpu.memory_space<vmem>>, vector<37x512xf32>
    %cst_11 = arith.constant dense<0.000000e+00> : vector<8x512xf32>
    %42 = tpu.matmul %40, %41, %cst_11 {dimension_numbers = #tpu.dot_dimension_numbers<[1], [0], [0], [1], [0, 0, 1, 1], [], []>} : vector<8x37xf32>, vector<37x512xf32>, vector<8x512xf32> -> vector<8x512xf32>
    %43 = vector.extract_strided_slice %42 {offsets = [0, 0], sizes = [8, 256], strides = [1, 1]} : vector<8x512xf32> to vector<8x256xf32>
    %c0_12 = arith.constant 0 : index
    %c0_13 = arith.constant 0 : index
    %c0_14 = arith.constant 0 : index
    %44 = vector.load %arg4[%c0_12, %c0_13, %c0_14] : memref<2x8x256xf32, #tpu.memory_space<vmem>>, vector<1x8x256xf32>
    %45 = vector.shape_cast %44 : vector<1x8x256xf32> to vector<8x256xf32>
    %46 = vector.shape_cast %43 : vector<8x256xf32> to vector<1x8x256xf32>
    tpu.vector_store %arg4[%c0_12, %c0_13, %c0_14], %46 {strides = array<i32>} : memref<2x8x256xf32, #tpu.memory_space<vmem>>, vector<1x8x256xf32>,
    %47 = vector.extract_strided_slice %42 {offsets = [0, 256], sizes = [8, 256], strides = [1, 1]} : vector<8x512xf32> to vector<8x256xf32>
    %c1 = arith.constant 1 : index
    %c0_15 = arith.constant 0 : index
    %c0_16 = arith.constant 0 : index
    %48 = vector.load %arg4[%c1, %c0_15, %c0_16] : memref<2x8x256xf32, #tpu.memory_space<vmem>>, vector<1x8x256xf32>
    %49 = vector.shape_cast %48 : vector<1x8x256xf32> to vector<8x256xf32>
    %50 = vector.shape_cast %47 : vector<8x256xf32> to vector<1x8x256xf32>
    tpu.vector_store %arg4[%c1, %c0_15, %c0_16], %50 {strides = array<i32>} : memref<2x8x256xf32, #tpu.memory_space<vmem>>, vector<1x8x256xf32>,
    %c0_17 = arith.constant 0 : index
    %c0_18 = arith.constant 0 : index
    %51 = vector.load %arg5[%c0_17, %c0_18] : memref<1x8xf32, #tpu.memory_space<vmem>>, vector<1x8xf32>
    tpu.vector_store %arg5[%c0_17, %c0_18], %28 {strides = array<i32>} : memref<1x8xf32, #tpu.memory_space<vmem>>, vector<1x8xf32>,
    %c0_19 = arith.constant 0 : index
    %c0_20 = arith.constant 0 : index
    %52 = vector.load %arg6[%c0_19, %c0_20] : memref<1x36xf32, #tpu.memory_space<vmem>>, vector<1x36xf32>
    tpu.vector_store %arg6[%c0_19, %c0_20], %15 {strides = array<i32>} : memref<1x36xf32, #tpu.memory_space<vmem>>, vector<1x36xf32>,
    return
  }
  func.func @transform_0(%arg0: i32) -> (i32, i32) {
    %c0_i32 = arith.constant 0 : i32
    %c0_i32_0 = arith.constant 0 : i32
    %c0_i32_1 = arith.constant 0 : i32
    return %c0_i32, %c0_i32_0 : i32, i32
  }
  func.func @transform_1(%arg0: i32) -> (i32, i32) {
    %c0_i32 = arith.constant 0 : i32
    %c0_i32_0 = arith.constant 0 : i32
    %c0_i32_1 = arith.constant 0 : i32
    return %c0_i32, %c0_i32_0 : i32, i32
  }
  func.func @transform_2(%arg0: i32) -> (i32, i32) {
    %c0_i32 = arith.constant 0 : i32
    %c0_i32_0 = arith.constant 0 : i32
    %c0_i32_1 = arith.constant 0 : i32
    return %c0_i32, %c0_i32_0 : i32, i32
  }
  func.func @transform_3(%arg0: i32) -> (i32, i32, i32) {
    %c0_i32 = arith.constant 0 : i32
    %c0_i32_0 = arith.constant 0 : i32
    %c0_i32_1 = arith.constant 0 : i32
    %c0_i32_2 = arith.constant 0 : i32
    return %c0_i32, %c0_i32_0, %c0_i32_1 : i32, i32, i32
  }
  func.func @transform_4(%arg0: i32) -> (i32, i32) {
    %c0_i32 = arith.constant 0 : i32
    %c0_i32_0 = arith.constant 0 : i32
    %c0_i32_1 = arith.constant 0 : i32
    return %c0_i32, %c0_i32_0 : i32, i32
  }
  func.func @transform_5(%arg0: i32) -> (i32, i32) {
    %c0_i32 = arith.constant 0 : i32
    %c0_i32_0 = arith.constant 0 : i32
    %c0_i32_1 = arith.constant 0 : i32
    return %c0_i32, %c0_i32_0 : i32, i32
  }
}

</mosaic_0001>

<llo_original>
// kernel: spectral_norm_conv_forward.1
$region0: #{spectral_norm_conv_forward.1}
  #allocation0 [shape = 'u32[]', space=smem, size = 0x4, offset = 0x4, fixed_abs, tag = 'smem constant byte address 0x4 - core index']
  #allocation1 [shape = 'u32[72,128]{1,0:T(1,128)}', space=vmem, size = 0x9000, scoped, tag = 'internal scratch']
  %s0 = inlined_call_operand.vmem [shape: f32[8,37], index: 0, kind: input, shape index: {}]
  %s1 = inlined_call_operand.vmem [shape: f32[1,8], index: 1, kind: input, shape index: {}]
  %s2 = inlined_call_operand.vmem [shape: f32[37,512], index: 2, kind: input, shape index: {}]
  %s3 = inlined_call_operand.vmem [shape: f32[2,8,256], index: 3, kind: output, shape index: {0}]
  %s4 = inlined_call_operand.hbm [shape: f32[1,8], index: 4, kind: output, shape index: {1}]
  %s5 = inlined_call_operand.hbm [shape: f32[1,36], index: 5, kind: output, shape index: {2}]
  %6 = xla_tuple %s3, %s4, %s5
  %s7 = sld [smem:[#allocation0]]
  $region38: #{spectral_norm_conv_forward.1} parent=0
    _
  %s9 = ssub.s32 1, %s7
  %s10 = scalar_select 0, %s9, %s7
  $region1: #{spectral_norm_conv_forward.1} parent=0
    #allocation2 [shape = 'u8[512]{0}', space=vmem, size = 0x400, scoped, tag = 'output window, operand 1, single buffered']
    #allocation3 [shape = 's32[1]{0}', space=sflag, size = 0x4, scoped, tag = 'scoped memory for spectral_norm_conv_forward.1']
    #allocation4 [shape = 'u8[512]{0}', space=vmem, size = 0x400, scoped, tag = 'output window, operand 2, single buffered']
    #allocation5 [shape = 's32[1]{0}', space=sflag, size = 0x4, scoped, tag = 'scoped memory for spectral_norm_conv_forward.1']
    %11 = vsyncpa [#allocation3], 0
    %12 = vsyncpa [#allocation5], 0
    // Predicated region
    $region2: #{spectral_norm_conv_forward.1} parent=1 // pred_check
      _
    $region3: #{spectral_norm_conv_forward.1} parent=1 // pred_check_branch
      %14 = sbr.rel (0) target = $region5
    $region4: #{spectral_norm_conv_forward.1} parent=1 // pred_region
      _
    $region5: #{spectral_norm_conv_forward.1} parent=1 // pred_fallthru
      _
    // Predicated region
    $region6: #{spectral_norm_conv_forward.1} parent=1 // pred_check
      _
    $region7: #{spectral_norm_conv_forward.1} parent=1 // pred_check_branch
      %16 = sbr.rel (0) target = $region9
    $region8: #{spectral_norm_conv_forward.1} parent=1 // pred_region
      _
    $region9: #{spectral_norm_conv_forward.1} parent=1 // pred_fallthru
      _
    // Predicated region
    $region10: #{spectral_norm_conv_forward.1} parent=1 // pred_check
      _
    $region11: #{spectral_norm_conv_forward.1} parent=1 // pred_check_branch
      %18 = sbr.rel (0) target = $region13
    $region12: #{spectral_norm_conv_forward.1} parent=1 // pred_region
      _
    $region13: #{spectral_norm_conv_forward.1} parent=1 // pred_fallthru
      _
    %v19 = vld [vmem:[%s0] sm:$0xff]
    %v20 = vld [vmem:[%s1] sm:$0x1]
    %vm21 = vcmask 64512
    %v23 = vsel %vm21, %v20, 0
    %25 = vmatpush.msra.mxu0 0.0
    %26 = vmatpush.msra.mxu0 0.0
    %27 = vmatpush.msra.mxu0 0.0
    %28 = vmatpush.msra.mxu0 0.0
    %29 = vmatpush.msra.mxu0 0.0
    %30 = vmatpush.msra.mxu0 0.0
    %31 = vmatpush.msra.mxu0 0.0
    %32 = vmatpush.msra.mxu0 0.0
    %33 = vmatpush.msra.mxu0 0.0
    %34 = vmatpush.msra.mxu0 0.0
    %35 = vmatpush.msra.mxu0 0.0
    %36 = vmatpush.msra.mxu0 0.0
    %37 = vmatpush.msra.mxu0 0.0
    %38 = vmatpush.msra.mxu0 0.0
    %39 = vmatpush.msra.mxu0 0.0
    %40 = vmatpush.msra.mxu0 %v19
    %41 = vmatmul.f32.gmra.mxu0 %v23
    %v42 = vpop.f32.mrf.mxu0
    %v43 = vadd.f32 0.0, %v42
    %44 = vdwg.mxu0
    %v45 = vmul.f32 %v43, %v43
    %vm46 = vcmask 286720
    %v47 = vsel %vm46, %v45, 0.0
    %48 = vadd.xlane.f32.xlu0 %v47
    %v49 = vpop.xlane.xlu0 %48
    %v50 = vrot.slane %v49, 4
    %v51 = vadd.f32 %v49, %v50
    %v52 = vrot.slane %v51, 2
    %v53 = vadd.f32 %v51, %v52
    %v54 = vrot.slane %v53, 1
    %v55 = vadd.f32 %v53, %v54
    %s56 = vtos %v55
    %v57 = vstv %s56
    %v58 = vrsqrt.pop %v57
    %v59 = vmul.f32 %v58, %v57
    %v60 = vmul.f32 %v59, %v58
    %v61 = vmul.f32 0.5, %v60
    %v62 = vsub.f32 1.5, %v61
    %v63 = vmul.f32 %v58, %v62
    %v64 = vmul.f32 %v57, %v63
    %vm65 = vcmp.eq.f32.partialorder %v57, inf
    %v66 = vsel %vm65, %v57, %v64
    %vm67 = vcmp.eq.f32.partialorder %v57, 0.0
    %v68 = vand.u32 %v57, 2147483648
    %v69 = vsel %vm67, %v68, %v66
    %v70 = vadd.f32 %v69, 1e-12
    %v71 = vrcp.pop %v70
    %v72 = vmul.f32 %v43, %v71
    %vm73 = vcmask 293888
    %v75 = vsel %vm73, %v72, 0
    %v78 = vsel %vm73, %v19, 0
    %80 = vmatpush.xpose.msra.mxu0 0.0
    %81 = vmatpush.xpose.msra.mxu0 0.0
    %82 = vmatpush.xpose.msra.mxu0 0.0
    %83 = vmatpush.xpose.msra.mxu0 0.0
    %84 = vmatpush.xpose.msra.mxu0 0.0
    %85 = vmatpush.xpose.msra.mxu0 0.0
    %86 = vmatpush.xpose.msra.mxu0 0.0
    %87 = vmatpush.xpose.msra.mxu0 0.0
    %88 = vmatpush.xpose.msra.mxu0 0.0
    %89 = vmatpush.xpose.msra.mxu0 0.0
    %90 = vmatpush.xpose.msra.mxu0 0.0
    %91 = vmatpush.xpose.msra.mxu0 0.0
    %92 = vmatpush.xpose.msra.mxu0 0.0
    %93 = vmatpush.xpose.msra.mxu0 0.0
    %94 = vmatpush.xpose.msra.mxu0 0.0
    %95 = vmatpush.xpose.msra.mxu0 %v78
    %96 = vmatmul.f32.gmra.mxu0 %v75
    %v97 = vpop.f32.mrf.mxu0
    %v98 = vadd.f32 0.0, %v97
    %99 = vdwg.mxu0
    %v100 = vmul.f32 %v98, %v98
    %vm101 = vcmask 57344
    %v102 = vsel %vm101, %v100, 0.0
    %103 = vadd.xlane.f32.xlu0 %v102
    %v104 = vpop.xlane.xlu0 %103
    %v105 = vrot.slane %v104, 4
    %v106 = vadd.f32 %v104, %v105
    %v107 = vrot.slane %v106, 2
    %v108 = vadd.f32 %v106, %v107
    %v109 = vrot.slane %v108, 1
    %v110 = vadd.f32 %v108, %v109
    %s111 = vtos %v110
    %v112 = vstv %s111
    %v113 = vrsqrt.pop %v112
    %v114 = vmul.f32 %v113, %v112
    %v115 = vmul.f32 %v114, %v113
    %v116 = vmul.f32 0.5, %v115
    %v117 = vsub.f32 1.5, %v116
    %v118 = vmul.f32 %v113, %v117
    %v119 = vmul.f32 %v112, %v118
    %vm120 = vcmp.eq.f32.partialorder %v112, inf
    %v121 = vsel %vm120, %v112, %v119
    %vm122 = vcmp.eq.f32.partialorder %v112, 0.0
    %v123 = vand.u32 %v112, 2147483648
    %v124 = vsel %vm122, %v123, %v121
    %v125 = vadd.f32 %v124, 1e-12
    %v126 = vrcp.pop %v125
    %v127 = vmul.f32 %v98, %v126
    %v128 = vmul.f32 %v124, %v124
    %v129 = vmul.f32 %v128, %v126
    %v130 = vrcp.pop %v129
    %v131 = vlaneseq
    %v132 = vand.u32 %v131, 127
    %vm133 = vcmp.lt.s32.totalorder %v132, 36
    %v134 = vsel %vm133, %v130, 1.0
    %v135 = vmul.f32 %v19, %v134
    %v136 = vld [vmem:[%s2] sm:$0xff]
    %v137 = vld [vmem:[%s2 + $0x8] sm:$0xff]
    %v138 = vld [vmem:[%s2 + $0x10] sm:$0xff]
    %v139 = vld [vmem:[%s2 + $0x18] sm:$0xff]
    %v140 = vld [vmem:[%s2 + $0x20] sm:$0xff]
    %v141 = vld [vmem:[%s2 + $0x28] sm:$0xff]
    %v142 = vld [vmem:[%s2 + $0x30] sm:$0xff]
    %v143 = vld [vmem:[%s2 + $0x38] sm:$0xff]
    %v144 = vld [vmem:[%s2 + $0x40] sm:$0xff]
    %v145 = vld [vmem:[%s2 + $0x48] sm:$0xff]
    %v146 = vld [vmem:[%s2 + $0x50] sm:$0xff]
    %v147 = vld [vmem:[%s2 + $0x58] sm:$0xff]
    %v148 = vld [vmem:[%s2 + $0x60] sm:$0xff]
    %v149 = vld [vmem:[%s2 + $0x68] sm:$0xff]
    %v150 = vld [vmem:[%s2 + $0x70] sm:$0xff]
    %v151 = vld [vmem:[%s2 + $0x78] sm:$0xff]
    %v152 = vld [vmem:[%s2 + $0x80] sm:$0x1f]
    %v153 = vld [vmem:[%s2 + $0x88] sm:$0x1f]
    %v154 = vld [vmem:[%s2 + $0x90] sm:$0x1f]
    %v155 = vld [vmem:[%s2 + $0x98] sm:$0x1f]
    %vm156 = vcmask 302080
    %v158 = vsel %vm156, %v135, 0
    %vm160 = vcmask 1044480
    %v162 = vsel %vm160, %v152, 0
    %v165 = vsel %vm160, %v153, 0
    %v168 = vsel %vm160, %v154, 0
    %v171 = vsel %vm160, %v155, 0
    %173 = vmatpush.msra.mxu0 0.0
    %174 = vmatpush.msra.mxu0 0.0
    %175 = vmatpush.msra.mxu0 0.0
    %176 = vmatpush.msra.mxu0 0.0
    %177 = vmatpush.msra.mxu0 0.0
    %178 = vmatpush.msra.mxu0 0.0
    %179 = vmatpush.msra.mxu0 0.0
    %180 = vmatpush.msra.mxu0 0.0
    %181 = vmatpush.msra.mxu0 0.0
    %182 = vmatpush.msra.mxu0 0.0
    %183 = vmatpush.msra.mxu0 0.0
    %184 = vmatpush.msra.mxu0 %v162
    %185 = vmatpush.msra.mxu0 %v148
    %186 = vmatpush.msra.mxu0 %v144
    %187 = vmatpush.msra.mxu0 %v140
    %188 = vmatpush.msra.mxu0 %v136
    %189 = vmatmul.f32.gmra.mxu0 %v158
    %v190 = vpop.f32.mrf.mxu0
    %v191 = vadd.f32 0.0, %v190
    %192 = vdwg.mxu0
    %193 = vmatpush.msra.mxu0 0.0
    %194 = vmatpush.msra.mxu0 0.0
    %195 = vmatpush.msra.mxu0 0.0
    %196 = vmatpush.msra.mxu0 0.0
    %197 = vmatpush.msra.mxu0 0.0
    %198 = vmatpush.msra.mxu0 0.0
    %199 = vmatpush.msra.mxu0 0.0
    %200 = vmatpush.msra.mxu0 0.0
    %201 = vmatpush.msra.mxu0 0.0
    %202 = vmatpush.msra.mxu0 0.0
    %203 = vmatpush.msra.mxu0 0.0
    %204 = vmatpush.msra.mxu0 %v165
    %205 = vmatpush.msra.mxu0 %v149
    %206 = vmatpush.msra.mxu0 %v145
    %207 = vmatpush.msra.mxu0 %v141
    %208 = vmatpush.msra.mxu0 %v137
    %209 = vmatmul.f32.gmra.mxu0 %v158
    %v210 = vpop.f32.mrf.mxu0
    %v211 = vadd.f32 0.0, %v210
    %212 = vdwg.mxu0
    %213 = vmatpush.msra.mxu0 0.0
    %214 = vmatpush.msra.mxu0 0.0
    %215 = vmatpush.msra.mxu0 0.0
    %216 = vmatpush.msra.mxu0 0.0
    %217 = vmatpush.msra.mxu0 0.0
    %218 = vmatpush.msra.mxu0 0.0
    %219 = vmatpush.msra.mxu0 0.0
    %220 = vmatpush.msra.mxu0 0.0
    %221 = vmatpush.msra.mxu0 0.0
    %222 = vmatpush.msra.mxu0 0.0
    %223 = vmatpush.msra.mxu0 0.0
    %224 = vmatpush.msra.mxu0 %v168
    %225 = vmatpush.msra.mxu0 %v150
    %226 = vmatpush.msra.mxu0 %v146
    %227 = vmatpush.msra.mxu0 %v142
    %228 = vmatpush.msra.mxu0 %v138
    %229 = vmatmul.f32.gmra.mxu0 %v158
    %v230 = vpop.f32.mrf.mxu0
    %v231 = vadd.f32 0.0, %v230
    %232 = vdwg.mxu0
    %233 = vmatpush.msra.mxu0 0.0
    %234 = vmatpush.msra.mxu0 0.0
    %235 = vmatpush.msra.mxu0 0.0
    %236 = vmatpush.msra.mxu0 0.0
    %237 = vmatpush.msra.mxu0 0.0
    %238 = vmatpush.msra.mxu0 0.0
    %239 = vmatpush.msra.mxu0 0.0
    %240 = vmatpush.msra.mxu0 0.0
    %241 = vmatpush.msra.mxu0 0.0
    %242 = vmatpush.msra.mxu0 0.0
    %243 = vmatpush.msra.mxu0 0.0
    %244 = vmatpush.msra.mxu0 %v171
    %245 = vmatpush.msra.mxu0 %v151
    %246 = vmatpush.msra.mxu0 %v147
    %247 = vmatpush.msra.mxu0 %v143
    %248 = vmatpush.msra.mxu0 %v139
    %249 = vmatmul.f32.gmra.mxu0 %v158
    %v250 = vpop.f32.mrf.mxu0
    %v251 = vadd.f32 0.0, %v250
    %252 = vdwg.mxu0
    %253 = vst [vmem:[%s3] sm:$0xff] %v191
    %254 = vst [vmem:[%s3 + $0x8] sm:$0xff] %v211
    %s255 = scalar_lea.vmem %s3, 16
    %256 = vst [vmem:[%s255] sm:$0xff] %v231
    %257 = vst [vmem:[%s255 + $0x8] sm:$0xff] %v251
    %258 = vst.msk [vmem:[#allocation2] sm:$0x1] %vm101, %v127
    %259 = vst.msk [vmem:[#allocation4] sm:$0x1] %vm46, %v72
    // Predicated region
    $region14: #{spectral_norm_conv_forward.1} parent=1 // pred_check
      _
    $region15: #{spectral_norm_conv_forward.1} parent=1 // pred_check_branch
      %261 = sbr.rel (0) target = $region17
    $region16: #{spectral_norm_conv_forward.1} parent=1 // pred_region
      _
    $region17: #{spectral_norm_conv_forward.1} parent=1 // pred_fallthru
      _
    // Predicated region
    $region18: #{spectral_norm_conv_forward.1} parent=1 // pred_check
      _
    $region19: #{spectral_norm_conv_forward.1} parent=1 // pred_check_branch
      %263 = sbr.rel (0) target = $region21
    $region20: #{spectral_norm_conv_forward.1} parent=1 // pred_region
      %265 = vsyncadd [#allocation3], 0
      %s267 = sshll.u32 [#allocation2], 4
      %s268 = int_to_ptr.vmem [resolvable:$true] %s267
      %s269 = sshll.u32 %s4, 4
      %s270 = int_to_ptr.hbm [resolvable:$true] %s269
      %272 = dma.vmem_to_hbm [thread:$0]  %s268, 16, %s270, [#allocation3]
    $region21: #{spectral_norm_conv_forward.1} parent=1 // pred_fallthru
      _
    // Predicated region
    $region22: #{spectral_norm_conv_forward.1} parent=1 // pred_check
      _
    $region23: #{spectral_norm_conv_forward.1} parent=1 // pred_check_branch
      %274 = sbr.rel (0) target = $region25
    $region24: #{spectral_norm_conv_forward.1} parent=1 // pred_region
      %276 = vsyncadd [#allocation5], 0
      %s278 = sshll.u32 [#allocation4], 4
      %s279 = int_to_ptr.vmem [resolvable:$true] %s278
      %s280 = sshll.u32 %s5, 4
      %s281 = int_to_ptr.hbm [resolvable:$true] %s280
      %283 = dma.vmem_to_hbm [thread:$0]  %s279, 16, %s281, [#allocation5]
    $region25: #{spectral_norm_conv_forward.1} parent=1 // pred_fallthru
      _
    // Predicated region
    $region26: #{spectral_norm_conv_forward.1} parent=1 // pred_check
      _
    $region27: #{spectral_norm_conv_forward.1} parent=1 // pred_check_branch
      %285 = sbr.rel (0) target = $region29
    $region28: #{spectral_norm_conv_forward.1} parent=1 // pred_region
      _
    $region29: #{spectral_norm_conv_forward.1} parent=1 // pred_fallthru
      _
    // Predicated region
    $region30: #{spectral_norm_conv_forward.1} parent=1 // pred_check
      _
    $region31: #{spectral_norm_conv_forward.1} parent=1 // pred_check_branch
      %287 = sbr.rel (0) target = $region33
    $region32: #{spectral_norm_conv_forward.1} parent=1 // pred_region
      %289 = dma.done [#allocation3], 16
    $region33: #{spectral_norm_conv_forward.1} parent=1 // pred_fallthru
      _
    // Predicated region
    $region34: #{spectral_norm_conv_forward.1} parent=1 // pred_check
      _
    $region35: #{spectral_norm_conv_forward.1} parent=1 // pred_check_branch
      %291 = sbr.rel (0) target = $region37
    $region36: #{spectral_norm_conv_forward.1} parent=1 // pred_region
      %293 = dma.done [#allocation5], 16
    $region37: #{spectral_norm_conv_forward.1} parent=1 // pred_fallthru
      _
    %294 = vsyncpa [#allocation3], 1
    %295 = vsyncpa [#allocation5], 1

</llo_original>
